<compile_context>
chip_gen: v7x
topology: tpu7x:2x2x1
jax: 0.10.0
libtpu: 0.0.40
codegen_flags: <defaults>
</compile_context>

<pallas_src>
import jax
import jax.numpy as jnp
from jax import lax
from jax.experimental import pallas as pl
from jax.experimental.pallas import tpu as pltpu

N_BASES = 10
MIN_VAL = 0.0
MAX_VAL = 1.0
LANES = 128
NUM_COEFS = 5                 # (a, q0, q1, q2, q3)
MIN_TILE_ROWS = 256           # amortize ~0.35us per-grid-step overhead
MAX_TILE_ROWS = 2048          # 2 x double-buffered 2048x128 f32 tiles ~= 4 MiB (fits v5e's
                              # 16 MiB default scoped VMEM with lots of headroom)
TARGET_GRID_STEPS = 4         # keep >=2 steps so v7x's 2 TensorCores both get work


# ----------------------------------------------------------------------------
# F-matrix construction (mirrors CubicSplineLayer.compute_F_and_S, F only).
# ----------------------------------------------------------------------------
def compute_F(knots):
    k = knots.shape[0]
    h = jnp.diff(knots)
    h_up = h[1:]
    D = jnp.zeros((k - 2, k), dtype=knots.dtype)
    D = D.at[:, : k - 2].add(jnp.diag(1.0 / h[: k - 2]))
    D = D.at[:, 1 : k - 1].add(jnp.diag(-1.0 / h[: k - 2] - 1.0 / h_up))
    D = D.at[:, 2:k].add(jnp.diag(1.0 / h_up))
    B = jnp.diag((h[: k - 2] + h_up) / 3.0)
    B = B.at[:-1, 1:].add(jnp.eye(k - 3, dtype=knots.dtype) * (h_up[: k - 3] / 6.0))
    B = B.at[1:, :-1].add(jnp.eye(k - 3, dtype=knots.dtype) * (h_up[: k - 3] / 6.0))
    F_minus = jnp.linalg.inv(B) @ D
    F = jnp.vstack(
        [jnp.zeros((1, k), knots.dtype), F_minus, jnp.zeros((1, k), knots.dtype)]
    )
    return F


# ----------------------------------------------------------------------------
# Wrapper-side fold:  basis + demean + Linear(n_bases, 1)  ->  per-interval cubic.
#
# For each extended interval e (0 = below range, 1..k-1 = interior, k = above range)
# the layer output is exactly  y(x) = q0 + q1*t + q2*t^2 + q3*t^3  with  t = x - a[e],
# where (with w = Linear weight, beta_eff = bias - mean.w, Fw = F @ w):
#   interior m (x in (knots[m-1], knots[m]]), h = knots[m]-knots[m-1]:
#     q0 = beta_eff + w[m-1]
#     q1 = -Fw[m-1]*h/3 - Fw[m]*h/6 + (w[m]-w[m-1])/h
#     q2 =  Fw[m-1]/2
#     q3 = (Fw[m]-Fw[m-1])/(6h)
#   below / above: the linear extrapolations of apply_spline_basis (q2 = q3 = 0).
# The scalar F[k-1, 1] in the above-range branch is kept verbatim from the PyTorch code
# (it broadcasts over the whole basis row there, i.e. contributes F[k-1,1]*sum(w)).
#
# Everything is packed into ONE flat SMEM array:
#   params[0:k]                         = knots
#   params[k + d*(k+1) + e]             = tab[d, e],  d in {a,q0,q1,q2,q3}, e in 0..k
# ----------------------------------------------------------------------------
def _build_params(knots, F, weight, bias, mean):
    k = knots.shape[0]
    knots = knots.astype(jnp.float32)
    F32 = F.astype(jnp.float32)
    w = weight.reshape(-1).astype(jnp.float32)          # (k,)
    mu = mean.reshape(-1).astype(jnp.float32)           # (k,)
    beta = jnp.reshape(bias, ()).astype(jnp.float32)
    beta_eff = beta - jnp.dot(mu, w)                    # demean folded into the bias
    Fw = F32 @ w                                        # (k,)
    wsum = jnp.sum(w)

    h = jnp.diff(knots)                                 # (k-1,)

    # interior intervals m = 1..k-1 (vectorized; index 0..k-2 below)
    A = Fw[:-1]                                         # Fw[m-1]
    B = Fw[1:]                                          # Fw[m]
    w_lo, w_hi = w[:-1], w[1:]
    a_int = knots[:-1]
    q0_int = beta_eff + w_lo
    q1_int = -A * h / 3.0 - B * h / 6.0 + (w_hi - w_lo) / h
    q2_int = A / 2.0
    q3_int = (B - A) / (6.0 * h)

    # below-range (x < knots[0]): linear in t = x - knots[0]
    h0 = h[0]
    a_lo = knots[0]
    q0_lo = beta_eff + w[0]
    q1_lo = -h0 / 3.0 * Fw[0] - h0 / 6.0 * Fw[1] + (w[1] - w[0]) / h0

    # above-range (x > knots[-1]): linear in t = x - knots[-1]
    hl = h[-1]
    a_hi = knots[-1]
    q0_hi = beta_eff + w[-1]
    q1_hi = hl / 6.0 * Fw[-2] + hl / 3.0 * F32[k - 1, 1] * wsum + (w[-1] - w[-2]) / hl

    zero = jnp.float32(0.0)

    def _ext(lo, mid, hi):
        return jnp.concatenate([jnp.reshape(lo, (1,)), mid, jnp.reshape(hi, (1,))])

    a_tab = _ext(a_lo, a_int, a_hi)                     # (k+1,)
    q0_tab = _ext(q0_lo, q0_int, q0_hi)
    q1_tab = _ext(q1_lo, q1_int, q1_hi)
    q2_tab = _ext(zero, q2_int, zero)
    q3_tab = _ext(zero, q3_int, zero)
    tab = jnp.stack([a_tab, q0_tab, q1_tab, q2_tab, q3_tab], axis=0)  # (5, k+1)

    # NOTE: the nested-mask overwrite-select lookup in the kernel requires monotone
    # non-decreasing knots (true for linspace and the softplus re-fit).
    return jnp.concatenate([knots, tab.reshape(-1)]).astype(jnp.float32)  # (k + 5*(k+1),)


# ----------------------------------------------------------------------------
# Pallas kernel: lane-dense piecewise-cubic evaluation with overwrite-select lookup.
# ----------------------------------------------------------------------------
def spline_kernel(params_ref, x_ref, out_ref):
    x = x_ref[...]                                       # (tile_rows, 128) f32

    def tab(d, e):                                       # absolute table value (SMEM scalar)
        return params_ref[N_BASES + d * (N_BASES + 1) + e]

    # Nested-mask interval selection (knots sorted): start from interval 1 / below-range,
    # then overwrite with interval m+1 wherever x > knots[m].  The LAST true compare wins,
    # so each coefficient ends up holding the value of the extended interval containing x
    # (0 = below range, 1..k-1 interior, k = above range).  Tie-breaking matches the
    # searchsorted / clip(1, k-1) semantics of the reference.
    below = x < params_ref[0]
    coef = [jnp.where(below, tab(d, 0), tab(d, 1)) for d in range(NUM_COEFS)]
    for m in range(1, N_BASES):                          # fully unrolled: 9 compares
        gm = x > params_ref[m]
        for d in range(NUM_COEFS):                       # 5 overwrite-selects per knot
            coef[d] = jnp.where(gm, tab(d, m + 1), coef[d])

    a, q0, q1, q2, q3 = coef
    t = x - a                                            # local coordinate (well conditioned)
    out_ref[...] = ((q3 * t + q2) * t + q1) * t + q0     # Horner; lane-dense full-tile store


# ----------------------------------------------------------------------------
# Tile-height chooser: multiple of 8, prefers a divisor of the row count (no pad copy),
# aims for >= TARGET_GRID_STEPS grid steps, caps at MAX_TILE_ROWS.
# ----------------------------------------------------------------------------
def _round_up8(v):
    return ((v + 7) // 8) * 8


def _choose_tile_rows(rows):
    rows8 = _round_up8(rows)
    if rows8 <= 8:
        return 8
    floor = min(MIN_TILE_ROWS, rows8 // 2)               # allow >=2 grid steps when possible
    target = (rows8 + TARGET_GRID_STEPS - 1) // TARGET_GRID_STEPS
    target = max(floor, target)
    target = min(MAX_TILE_ROWS, rows8, target)
    target = min(_round_up8(target), rows8)
    # Prefer a tile that exactly divides rows8 so the wrapper never needs jnp.pad
    # (jnp.pad costs a full extra HBM read+write of the input).
    cand = target
    lo = max(8, target // 2)
    while cand >= lo:
        if rows8 % cand == 0:
            return cand
        cand -= 8
    return target


def cubic_spline_forward(x, knots, F, weight, bias, mean):
    xf = x.reshape(-1).astype(jnp.float32)
    n = xf.shape[0]

    params = _build_params(knots, F, weight, bias, mean)

    # Lane-dense layout: elements on the 128-lane axis, big row tiles.
    rows = pl.cdiv(n, LANES)
    tile_rows = _choose_tile_rows(rows)
    rows_pad = pl.cdiv(rows, tile_rows) * tile_rows
    n_pad = rows_pad * LANES

    if n_pad != n:                                       # only pad when unavoidable
        xf = jnp.pad(xf, (0, n_pad - n))
    x2d = xf.reshape(rows_pad, LANES)

    out2d = pl.pallas_call(
        spline_kernel,
        out_shape=jax.ShapeDtypeStruct((rows_pad, LANES), jnp.float32),
        grid=(rows_pad // tile_rows,),
        in_specs=[
            pl.BlockSpec(memory_space=pltpu.MemorySpace.SMEM),      # packed scalars (knots+tab)
            pl.BlockSpec((tile_rows, LANES), lambda i: (i, 0)),     # x tile (lane-dense)
        ],
        out_specs=pl.BlockSpec((tile_rows, LANES), lambda i: (i, 0)),
        compiler_params=pltpu.CompilerParams(dimension_semantics=("parallel",)),
    )(params, x2d)

    out_flat = out2d.reshape(-1)
    if n_pad != n:                                       # only slice when we actually padded
        out_flat = out_flat[:n]
    return out_flat[:, None]                             # (n, 1) like nn.Linear(..., 1)


# ----------------------------------------------------------------------------
# Pure-JAX reference mirroring the PyTorch apply_spline_basis / demean / linear path
# (formula-for-formula faithful, including the scalar F[j, 1] in the above-range branch
# and the searchsorted tie-breaking).
# ----------------------------------------------------------------------------
def _spline_basis_ref(x, knots, F):
    T = x.shape[0]
    k = knots.shape[0]
    xcol = x[:, None]
    iota = lax.broadcasted_iota(jnp.int32, (T, k), 1)

    j = jnp.sum((knots[None, :] < xcol).astype(jnp.int32), axis=1)
    j = jnp.clip(j, 1, k - 1)
    oh_j = (iota == j[:, None]).astype(jnp.float32)
    oh_jm1 = (iota == (j - 1)[:, None]).astype(jnp.float32)
    x_j = jnp.sum(oh_jm1 * knots[None, :], axis=1)
    x_j1 = jnp.sum(oh_j * knots[None, :], axis=1)
    h = x_j1 - x_j
    a_jm = (x_j1 - x) / h
    a_jp = (x - x_j) / h
    c_jm = ((x_j1 - x) ** 3 / h - h * (x_j1 - x)) / 6.0
    c_jp = ((x - x_j) ** 3 / h - h * (x - x_j)) / 6.0
    F_jm1 = jnp.dot(oh_jm1, F, preferred_element_type=jnp.float32)
    F_j = jnp.dot(oh_j, F, preferred_element_type=jnp.float32)
    base_in = (
        c_jm[:, None] * F_jm1
        + c_jp[:, None] * F_j
        + a_jm[:, None] * oh_jm1
        + a_jp[:, None] * oh_j
    )

    h0 = knots[1] - knots[0]
    xik0 = x - knots[0]
    e0 = (iota == 0).astype(jnp.float32)
    e1 = (iota == 1).astype(jnp.float32)
    base_lo = (
        (-xik0 * h0 / 3.0)[:, None] * F[0, :][None, :]
        + (-xik0 * h0 / 6.0)[:, None] * F[1, :][None, :]
        + (1.0 - xik0 / h0)[:, None] * e0
        + (xik0 / h0)[:, None] * e1
    )

    jl = k - 1
    hl = knots[jl] - knots[jl - 1]
    xikl = x - knots[jl]
    ekm1 = (iota == jl - 1).astype(jnp.float32)
    ek = (iota == jl).astype(jnp.float32)
    base_hi = (
        (xikl * hl / 6.0)[:, None] * F[jl - 1, :][None, :]
        + (xikl * hl / 3.0)[:, None] * F[jl, 1]
        + (-xikl / hl)[:, None] * ekm1
        + (1.0 + xikl / hl)[:, None] * ek
    )

    below = xcol < knots[0]
    above = xcol > knots[k - 1]
    return jnp.where(below, base_lo, jnp.where(above, base_hi, base_in))


def reference_forward(x, knots, F, weight, bias, mean):
    xf = x.reshape(-1).astype(jnp.float32)
    base = _spline_basis_ref(xf, knots, F)
    base = base - mean.reshape(1, -1)
    return base @ weight.reshape(-1, 1) + bias.reshape(1, 1)


if __name__ == "__main__":
    key = jax.random.PRNGKey(0)
    k1, k2, k3, k4 = jax.random.split(key, 4)

    # Input: NCHW (2, 4, 16, 16), values spilling slightly past [0, 1] so that all three
    # spline branches (below / interior / above) are exercised.
    x = jax.random.uniform(k1, (2, 4, 16, 16), jnp.float32, minval=-0.2, maxval=1.2)

    # Parameters (shapes from __init__): uniform knots, F from compute_F_and_S, nn.Linear
    # weight/bias, RunningMean buffer (nonzero here to emulate a trained buffer and exercise
    # the demean fold; it is zero-initialized in a fresh module).
    knots = jnp.linspace(MIN_VAL, MAX_VAL, N_BASES).astype(jnp.float32)
    F = compute_F(knots)
    bound = 1.0 / jnp.sqrt(jnp.float32(N_BASES))
    weight = jax.random.uniform(k2, (1, N_BASES), jnp.float32, -bound, bound)
    bias = jax.random.uniform(k3, (1,), jnp.float32, -bound, bound)
    mean = jax.random.uniform(k4, (1, N_BASES), jnp.float32, -0.05, 0.05)
    # TODO(synk): training-time RunningMean buffer update and the learn_knots softplus re-fit
    # are stateful train-only paths and are not part of this inference kernel.

    # The nested-mask lookup requires monotone knots (always true for linspace / softplus fit).
    assert bool(jnp.all(jnp.diff(knots) > 0)), "knots must be strictly increasing"

    out = cubic_spline_forward(x, knots, F, weight, bias, mean)
    out = jax.block_until_ready(out)

    ref = reference_forward(x, knots, F, weight, bias, mean)
    assert out.shape == (2 * 4 * 16 * 16, 1)
    max_err = float(jnp.max(jnp.abs(out - ref)))
    assert jnp.allclose(out, ref, rtol=1e-4, atol=1e-4), f"max abs err = {max_err}"
    print("KERNEL_OK")
</pallas_src>

<mosaic_0001>
module attributes {stable_mosaic.version = 11 : i64} {
  func.func @spline_kernel(%arg0: i32, %arg1: memref<65xf32, #tpu.memory_space<smem>>, %arg2: memref<8x128xf32, #tpu.memory_space<vmem>>, %arg3: memref<8x128xf32, #tpu.memory_space<vmem>>) attributes {dimension_semantics = [#tpu.dimension_semantics<parallel>], iteration_bounds = array<i64: 2>, scalar_prefetch = 0 : i64, scratch_operands = 0 : i64, tpu.core_type = #tpu.core_type<tc>, window_params = [{transform_indices = @transform_0, window_bounds = array<i64: 65>}, {transform_indices = @transform_1, window_bounds = array<i64: 8, 128>}, {transform_indices = @transform_2, window_bounds = array<i64: 8, 128>}]} {
    %c0 = arith.constant 0 : index
    %c0_0 = arith.constant 0 : index
    %0 = vector.load %arg2[%c0, %c0_0] : memref<8x128xf32, #tpu.memory_space<vmem>>, vector<8x128xf32>
    %c0_1 = arith.constant 0 : index
    %1 = memref.load %arg1[%c0_1] : memref<65xf32, #tpu.memory_space<smem>>
    %2 = vector.broadcast %1 : f32 to vector<8x128xf32>
    %3 = arith.cmpf olt, %0, %2 : vector<8x128xf32>
    %c10 = arith.constant 10 : index
    %4 = memref.load %arg1[%c10] : memref<65xf32, #tpu.memory_space<smem>>
    %c11 = arith.constant 11 : index
    %5 = memref.load %arg1[%c11] : memref<65xf32, #tpu.memory_space<smem>>
    %6 = vector.broadcast %4 : f32 to vector<8x128xf32>
    %7 = vector.broadcast %5 : f32 to vector<8x128xf32>
    %8 = arith.select %3, %6, %7 : vector<8x128xi1>, vector<8x128xf32>
    %c21 = arith.constant 21 : index
    %9 = memref.load %arg1[%c21] : memref<65xf32, #tpu.memory_space<smem>>
    %c22 = arith.constant 22 : index
    %10 = memref.load %arg1[%c22] : memref<65xf32, #tpu.memory_space<smem>>
    %11 = vector.broadcast %9 : f32 to vector<8x128xf32>
    %12 = vector.broadcast %10 : f32 to vector<8x128xf32>
    %13 = arith.select %3, %11, %12 : vector<8x128xi1>, vector<8x128xf32>
    %c32 = arith.constant 32 : index
    %14 = memref.load %arg1[%c32] : memref<65xf32, #tpu.memory_space<smem>>
    %c33 = arith.constant 33 : index
    %15 = memref.load %arg1[%c33] : memref<65xf32, #tpu.memory_space<smem>>
    %16 = vector.broadcast %14 : f32 to vector<8x128xf32>
    %17 = vector.broadcast %15 : f32 to vector<8x128xf32>
    %18 = arith.select %3, %16, %17 : vector<8x128xi1>, vector<8x128xf32>
    %c43 = arith.constant 43 : index
    %19 = memref.load %arg1[%c43] : memref<65xf32, #tpu.memory_space<smem>>
    %c44 = arith.constant 44 : index
    %20 = memref.load %arg1[%c44] : memref<65xf32, #tpu.memory_space<smem>>
    %21 = vector.broadcast %19 : f32 to vector<8x128xf32>
    %22 = vector.broadcast %20 : f32 to vector<8x128xf32>
    %23 = arith.select %3, %21, %22 : vector<8x128xi1>, vector<8x128xf32>
    %c54 = arith.constant 54 : index
    %24 = memref.load %arg1[%c54] : memref<65xf32, #tpu.memory_space<smem>>
    %c55 = arith.constant 55 : index
    %25 = memref.load %arg1[%c55] : memref<65xf32, #tpu.memory_space<smem>>
    %26 = vector.broadcast %24 : f32 to vector<8x128xf32>
    %27 = vector.broadcast %25 : f32 to vector<8x128xf32>
    %28 = arith.select %3, %26, %27 : vector<8x128xi1>, vector<8x128xf32>
    %c1 = arith.constant 1 : index
    %29 = memref.load %arg1[%c1] : memref<65xf32, #tpu.memory_space<smem>>
    %30 = vector.broadcast %29 : f32 to vector<8x128xf32>
    %31 = arith.cmpf ogt, %0, %30 : vector<8x128xf32>
    %c12 = arith.constant 12 : index
    %32 = memref.load %arg1[%c12] : memref<65xf32, #tpu.memory_space<smem>>
    %33 = vector.broadcast %32 : f32 to vector<8x128xf32>
    %34 = arith.select %31, %33, %8 : vector<8x128xi1>, vector<8x128xf32>
    %c23 = arith.constant 23 : index
    %35 = memref.load %arg1[%c23] : memref<65xf32, #tpu.memory_space<smem>>
    %36 = vector.broadcast %35 : f32 to vector<8x128xf32>
    %37 = arith.select %31, %36, %13 : vector<8x128xi1>, vector<8x128xf32>
    %c34 = arith.constant 34 : index
    %38 = memref.load %arg1[%c34] : memref<65xf32, #tpu.memory_space<smem>>
    %39 = vector.broadcast %38 : f32 to vector<8x128xf32>
    %40 = arith.select %31, %39, %18 : vector<8x128xi1>, vector<8x128xf32>
    %c45 = arith.constant 45 : index
    %41 = memref.load %arg1[%c45] : memref<65xf32, #tpu.memory_space<smem>>
    %42 = vector.broadcast %41 : f32 to vector<8x128xf32>
    %43 = arith.select %31, %42, %23 : vector<8x128xi1>, vector<8x128xf32>
    %c56 = arith.constant 56 : index
    %44 = memref.load %arg1[%c56] : memref<65xf32, #tpu.memory_space<smem>>
    %45 = vector.broadcast %44 : f32 to vector<8x128xf32>
    %46 = arith.select %31, %45, %28 : vector<8x128xi1>, vector<8x128xf32>
    %c2 = arith.constant 2 : index
    %47 = memref.load %arg1[%c2] : memref<65xf32, #tpu.memory_space<smem>>
    %48 = vector.broadcast %47 : f32 to vector<8x128xf32>
    %49 = arith.cmpf ogt, %0, %48 : vector<8x128xf32>
    %c13 = arith.constant 13 : index
    %50 = memref.load %arg1[%c13] : memref<65xf32, #tpu.memory_space<smem>>
    %51 = vector.broadcast %50 : f32 to vector<8x128xf32>
    %52 = arith.select %49, %51, %34 : vector<8x128xi1>, vector<8x128xf32>
    %c24 = arith.constant 24 : index
    %53 = memref.load %arg1[%c24] : memref<65xf32, #tpu.memory_space<smem>>
    %54 = vector.broadcast %53 : f32 to vector<8x128xf32>
    %55 = arith.select %49, %54, %37 : vector<8x128xi1>, vector<8x128xf32>
    %c35 = arith.constant 35 : index
    %56 = memref.load %arg1[%c35] : memref<65xf32, #tpu.memory_space<smem>>
    %57 = vector.broadcast %56 : f32 to vector<8x128xf32>
    %58 = arith.select %49, %57, %40 : vector<8x128xi1>, vector<8x128xf32>
    %c46 = arith.constant 46 : index
    %59 = memref.load %arg1[%c46] : memref<65xf32, #tpu.memory_space<smem>>
    %60 = vector.broadcast %59 : f32 to vector<8x128xf32>
    %61 = arith.select %49, %60, %43 : vector<8x128xi1>, vector<8x128xf32>
    %c57 = arith.constant 57 : index
    %62 = memref.load %arg1[%c57] : memref<65xf32, #tpu.memory_space<smem>>
    %63 = vector.broadcast %62 : f32 to vector<8x128xf32>
    %64 = arith.select %49, %63, %46 : vector<8x128xi1>, vector<8x128xf32>
    %c3 = arith.constant 3 : index
    %65 = memref.load %arg1[%c3] : memref<65xf32, #tpu.memory_space<smem>>
    %66 = vector.broadcast %65 : f32 to vector<8x128xf32>
    %67 = arith.cmpf ogt, %0, %66 : vector<8x128xf32>
    %c14 = arith.constant 14 : index
    %68 = memref.load %arg1[%c14] : memref<65xf32, #tpu.memory_space<smem>>
    %69 = vector.broadcast %68 : f32 to vector<8x128xf32>
    %70 = arith.select %67, %69, %52 : vector<8x128xi1>, vector<8x128xf32>
    %c25 = arith.constant 25 : index
    %71 = memref.load %arg1[%c25] : memref<65xf32, #tpu.memory_space<smem>>
    %72 = vector.broadcast %71 : f32 to vector<8x128xf32>
    %73 = arith.select %67, %72, %55 : vector<8x128xi1>, vector<8x128xf32>
    %c36 = arith.constant 36 : index
    %74 = memref.load %arg1[%c36] : memref<65xf32, #tpu.memory_space<smem>>
    %75 = vector.broadcast %74 : f32 to vector<8x128xf32>
    %76 = arith.select %67, %75, %58 : vector<8x128xi1>, vector<8x128xf32>
    %c47 = arith.constant 47 : index
    %77 = memref.load %arg1[%c47] : memref<65xf32, #tpu.memory_space<smem>>
    %78 = vector.broadcast %77 : f32 to vector<8x128xf32>
    %79 = arith.select %67, %78, %61 : vector<8x128xi1>, vector<8x128xf32>
    %c58 = arith.constant 58 : index
    %80 = memref.load %arg1[%c58] : memref<65xf32, #tpu.memory_space<smem>>
    %81 = vector.broadcast %80 : f32 to vector<8x128xf32>
    %82 = arith.select %67, %81, %64 : vector<8x128xi1>, vector<8x128xf32>
    %c4 = arith.constant 4 : index
    %83 = memref.load %arg1[%c4] : memref<65xf32, #tpu.memory_space<smem>>
    %84 = vector.broadcast %83 : f32 to vector<8x128xf32>
    %85 = arith.cmpf ogt, %0, %84 : vector<8x128xf32>
    %c15 = arith.constant 15 : index
    %86 = memref.load %arg1[%c15] : memref<65xf32, #tpu.memory_space<smem>>
    %87 = vector.broadcast %86 : f32 to vector<8x128xf32>
    %88 = arith.select %85, %87, %70 : vector<8x128xi1>, vector<8x128xf32>
    %c26 = arith.constant 26 : index
    %89 = memref.load %arg1[%c26] : memref<65xf32, #tpu.memory_space<smem>>
    %90 = vector.broadcast %89 : f32 to vector<8x128xf32>
    %91 = arith.select %85, %90, %73 : vector<8x128xi1>, vector<8x128xf32>
    %c37 = arith.constant 37 : index
    %92 = memref.load %arg1[%c37] : memref<65xf32, #tpu.memory_space<smem>>
    %93 = vector.broadcast %92 : f32 to vector<8x128xf32>
    %94 = arith.select %85, %93, %76 : vector<8x128xi1>, vector<8x128xf32>
    %c48 = arith.constant 48 : index
    %95 = memref.load %arg1[%c48] : memref<65xf32, #tpu.memory_space<smem>>
    %96 = vector.broadcast %95 : f32 to vector<8x128xf32>
    %97 = arith.select %85, %96, %79 : vector<8x128xi1>, vector<8x128xf32>
    %c59 = arith.constant 59 : index
    %98 = memref.load %arg1[%c59] : memref<65xf32, #tpu.memory_space<smem>>
    %99 = vector.broadcast %98 : f32 to vector<8x128xf32>
    %100 = arith.select %85, %99, %82 : vector<8x128xi1>, vector<8x128xf32>
    %c5 = arith.constant 5 : index
    %101 = memref.load %arg1[%c5] : memref<65xf32, #tpu.memory_space<smem>>
    %102 = vector.broadcast %101 : f32 to vector<8x128xf32>
    %103 = arith.cmpf ogt, %0, %102 : vector<8x128xf32>
    %c16 = arith.constant 16 : index
    %104 = memref.load %arg1[%c16] : memref<65xf32, #tpu.memory_space<smem>>
    %105 = vector.broadcast %104 : f32 to vector<8x128xf32>
    %106 = arith.select %103, %105, %88 : vector<8x128xi1>, vector<8x128xf32>
    %c27 = arith.constant 27 : index
    %107 = memref.load %arg1[%c27] : memref<65xf32, #tpu.memory_space<smem>>
    %108 = vector.broadcast %107 : f32 to vector<8x128xf32>
    %109 = arith.select %103, %108, %91 : vector<8x128xi1>, vector<8x128xf32>
    %c38 = arith.constant 38 : index
    %110 = memref.load %arg1[%c38] : memref<65xf32, #tpu.memory_space<smem>>
    %111 = vector.broadcast %110 : f32 to vector<8x128xf32>
    %112 = arith.select %103, %111, %94 : vector<8x128xi1>, vector<8x128xf32>
    %c49 = arith.constant 49 : index
    %113 = memref.load %arg1[%c49] : memref<65xf32, #tpu.memory_space<smem>>
    %114 = vector.broadcast %113 : f32 to vector<8x128xf32>
    %115 = arith.select %103, %114, %97 : vector<8x128xi1>, vector<8x128xf32>
    %c60 = arith.constant 60 : index
    %116 = memref.load %arg1[%c60] : memref<65xf32, #tpu.memory_space<smem>>
    %117 = vector.broadcast %116 : f32 to vector<8x128xf32>
    %118 = arith.select %103, %117, %100 : vector<8x128xi1>, vector<8x128xf32>
    %c6 = arith.constant 6 : index
    %119 = memref.load %arg1[%c6] : memref<65xf32, #tpu.memory_space<smem>>
    %120 = vector.broadcast %119 : f32 to vector<8x128xf32>
    %121 = arith.cmpf ogt, %0, %120 : vector<8x128xf32>
    %c17 = arith.constant 17 : index
    %122 = memref.load %arg1[%c17] : memref<65xf32, #tpu.memory_space<smem>>
    %123 = vector.broadcast %122 : f32 to vector<8x128xf32>
    %124 = arith.select %121, %123, %106 : vector<8x128xi1>, vector<8x128xf32>
    %c28 = arith.constant 28 : index
    %125 = memref.load %arg1[%c28] : memref<65xf32, #tpu.memory_space<smem>>
    %126 = vector.broadcast %125 : f32 to vector<8x128xf32>
    %127 = arith.select %121, %126, %109 : vector<8x128xi1>, vector<8x128xf32>
    %c39 = arith.constant 39 : index
    %128 = memref.load %arg1[%c39] : memref<65xf32, #tpu.memory_space<smem>>
    %129 = vector.broadcast %128 : f32 to vector<8x128xf32>
    %130 = arith.select %121, %129, %112 : vector<8x128xi1>, vector<8x128xf32>
    %c50 = arith.constant 50 : index
    %131 = memref.load %arg1[%c50] : memref<65xf32, #tpu.memory_space<smem>>
    %132 = vector.broadcast %131 : f32 to vector<8x128xf32>
    %133 = arith.select %121, %132, %115 : vector<8x128xi1>, vector<8x128xf32>
    %c61 = arith.constant 61 : index
    %134 = memref.load %arg1[%c61] : memref<65xf32, #tpu.memory_space<smem>>
    %135 = vector.broadcast %134 : f32 to vector<8x128xf32>
    %136 = arith.select %121, %135, %118 : vector<8x128xi1>, vector<8x128xf32>
    %c7 = arith.constant 7 : index
    %137 = memref.load %arg1[%c7] : memref<65xf32, #tpu.memory_space<smem>>
    %138 = vector.broadcast %137 : f32 to vector<8x128xf32>
    %139 = arith.cmpf ogt, %0, %138 : vector<8x128xf32>
    %c18 = arith.constant 18 : index
    %140 = memref.load %arg1[%c18] : memref<65xf32, #tpu.memory_space<smem>>
    %141 = vector.broadcast %140 : f32 to vector<8x128xf32>
    %142 = arith.select %139, %141, %124 : vector<8x128xi1>, vector<8x128xf32>
    %c29 = arith.constant 29 : index
    %143 = memref.load %arg1[%c29] : memref<65xf32, #tpu.memory_space<smem>>
    %144 = vector.broadcast %143 : f32 to vector<8x128xf32>
    %145 = arith.select %139, %144, %127 : vector<8x128xi1>, vector<8x128xf32>
    %c40 = arith.constant 40 : index
    %146 = memref.load %arg1[%c40] : memref<65xf32, #tpu.memory_space<smem>>
    %147 = vector.broadcast %146 : f32 to vector<8x128xf32>
    %148 = arith.select %139, %147, %130 : vector<8x128xi1>, vector<8x128xf32>
    %c51 = arith.constant 51 : index
    %149 = memref.load %arg1[%c51] : memref<65xf32, #tpu.memory_space<smem>>
    %150 = vector.broadcast %149 : f32 to vector<8x128xf32>
    %151 = arith.select %139, %150, %133 : vector<8x128xi1>, vector<8x128xf32>
    %c62 = arith.constant 62 : index
    %152 = memref.load %arg1[%c62] : memref<65xf32, #tpu.memory_space<smem>>
    %153 = vector.broadcast %152 : f32 to vector<8x128xf32>
    %154 = arith.select %139, %153, %136 : vector<8x128xi1>, vector<8x128xf32>
    %c8 = arith.constant 8 : index
    %155 = memref.load %arg1[%c8] : memref<65xf32, #tpu.memory_space<smem>>
    %156 = vector.broadcast %155 : f32 to vector<8x128xf32>
    %157 = arith.cmpf ogt, %0, %156 : vector<8x128xf32>
    %c19 = arith.constant 19 : index
    %158 = memref.load %arg1[%c19] : memref<65xf32, #tpu.memory_space<smem>>
    %159 = vector.broadcast %158 : f32 to vector<8x128xf32>
    %160 = arith.select %157, %159, %142 : vector<8x128xi1>, vector<8x128xf32>
    %c30 = arith.constant 30 : index
    %161 = memref.load %arg1[%c30] : memref<65xf32, #tpu.memory_space<smem>>
    %162 = vector.broadcast %161 : f32 to vector<8x128xf32>
    %163 = arith.select %157, %162, %145 : vector<8x128xi1>, vector<8x128xf32>
    %c41 = arith.constant 41 : index
    %164 = memref.load %arg1[%c41] : memref<65xf32, #tpu.memory_space<smem>>
    %165 = vector.broadcast %164 : f32 to vector<8x128xf32>
    %166 = arith.select %157, %165, %148 : vector<8x128xi1>, vector<8x128xf32>
    %c52 = arith.constant 52 : index
    %167 = memref.load %arg1[%c52] : memref<65xf32, #tpu.memory_space<smem>>
    %168 = vector.broadcast %167 : f32 to vector<8x128xf32>
    %169 = arith.select %157, %168, %151 : vector<8x128xi1>, vector<8x128xf32>
    %c63 = arith.constant 63 : index
    %170 = memref.load %arg1[%c63] : memref<65xf32, #tpu.memory_space<smem>>
    %171 = vector.broadcast %170 : f32 to vector<8x128xf32>
    %172 = arith.select %157, %171, %154 : vector<8x128xi1>, vector<8x128xf32>
    %c9 = arith.constant 9 : index
    %173 = memref.load %arg1[%c9] : memref<65xf32, #tpu.memory_space<smem>>
    %174 = vector.broadcast %173 : f32 to vector<8x128xf32>
    %175 = arith.cmpf ogt, %0, %174 : vector<8x128xf32>
    %c20 = arith.constant 20 : index
    %176 = memref.load %arg1[%c20] : memref<65xf32, #tpu.memory_space<smem>>
    %177 = vector.broadcast %176 : f32 to vector<8x128xf32>
    %178 = arith.select %175, %177, %160 : vector<8x128xi1>, vector<8x128xf32>
    %c31 = arith.constant 31 : index
    %179 = memref.load %arg1[%c31] : memref<65xf32, #tpu.memory_space<smem>>
    %180 = vector.broadcast %179 : f32 to vector<8x128xf32>
    %181 = arith.select %175, %180, %163 : vector<8x128xi1>, vector<8x128xf32>
    %c42 = arith.constant 42 : index
    %182 = memref.load %arg1[%c42] : memref<65xf32, #tpu.memory_space<smem>>
    %183 = vector.broadcast %182 : f32 to vector<8x128xf32>
    %184 = arith.select %175, %183, %166 : vector<8x128xi1>, vector<8x128xf32>
    %c53 = arith.constant 53 : index
    %185 = memref.load %arg1[%c53] : memref<65xf32, #tpu.memory_space<smem>>
    %186 = vector.broadcast %185 : f32 to vector<8x128xf32>
    %187 = arith.select %175, %186, %169 : vector<8x128xi1>, vector<8x128xf32>
    %c64 = arith.constant 64 : index
    %188 = memref.load %arg1[%c64] : memref<65xf32, #tpu.memory_space<smem>>
    %189 = vector.broadcast %188 : f32 to vector<8x128xf32>
    %190 = arith.select %175, %189, %172 : vector<8x128xi1>, vector<8x128xf32>
    %191 = arith.subf %0, %178 : vector<8x128xf32>
    %192 = arith.mulf %190, %191 : vector<8x128xf32>
    %193 = arith.addf %192, %187 : vector<8x128xf32>
    %194 = arith.mulf %193, %191 : vector<8x128xf32>
    %195 = arith.addf %194, %184 : vector<8x128xf32>
    %196 = arith.mulf %195, %191 : vector<8x128xf32>
    %197 = arith.addf %196, %181 : vector<8x128xf32>
    %c0_2 = arith.constant 0 : index
    %c0_3 = arith.constant 0 : index
    %198 = vector.load %arg3[%c0_2, %c0_3] : memref<8x128xf32, #tpu.memory_space<vmem>>, vector<8x128xf32>
    tpu.vector_store %arg3[%c0_2, %c0_3], %197 {strides = array<i32>} : memref<8x128xf32, #tpu.memory_space<vmem>>, vector<8x128xf32>,
    return
  }
  func.func @transform_0(%arg0: i32) -> i32 {
    %c0_i32 = arith.constant 0 : i32
    %c0_i32_0 = arith.constant 0 : i32
    return %c0_i32 : i32
  }
  func.func @transform_1(%arg0: i32) -> (i32, i32) {
    %c0_i32 = arith.constant 0 : i32
    %c0_i32_0 = arith.constant 0 : i32
    return %arg0, %c0_i32 : i32, i32
  }
  func.func @transform_2(%arg0: i32) -> (i32, i32) {
    %c0_i32 = arith.constant 0 : i32
    %c0_i32_0 = arith.constant 0 : i32
    return %arg0, %c0_i32 : i32, i32
  }
}

</mosaic_0001>

<llo_original>
// kernel: tpu_custom_call.1
$region0: #{tpu_custom_call.1}
  #allocation0 [shape = 'u32[]', space=smem, size = 0x4, offset = 0x4, fixed_abs, tag = 'smem constant byte address 0x4 - core index']
  #allocation1 [shape = 'u32[144,128]{1,0:T(1,128)}', space=vmem, size = 0x12000, scoped, tag = 'internal scratch']
  %s0 = inlined_call_operand.hbm [shape: f32[65], index: 0, kind: input, shape index: {}]
  %s1 = inlined_call_operand.hbm [shape: f32[16,128], index: 1, kind: input, shape index: {}]
  %s2 = inlined_call_operand.hbm [shape: f32[16,128], index: 2, kind: output, shape index: {}]
  %s3 = sld [smem:[#allocation0]]
  $region49: #{tpu_custom_call.1} parent=0
    _
  %s5 = ssub.s32 1, %s3
  %s6 = scalar_select 0, %s5, %s3
  $region1: #{tpu_custom_call.1} parent=0
    #allocation2 [shape = 'u8[512]{0}', space=smem, size = 0x200, scoped, tag = 'input window, operand 0, single buffered']
    #allocation3 [shape = 's32[2]{0}', space=sflag, size = 0x8, scoped, tag = 'scoped memory for tpu_custom_call.1']
    #allocation4 [shape = 's32[2]{0}', space=sflag, size = 0x8, scoped, tag = 'scoped memory for tpu_custom_call.1']
    #allocation5 [shape = 's32[2]{0}', space=sflag, size = 0x8, scoped, tag = 'scoped memory for tpu_custom_call.1']
    #allocation6 [shape = 'u8[8192]{0}', space=vmem, size = 0x2000, scoped, tag = 'input window, operand 1']
    #allocation7 [shape = 'u8[8192]{0}', space=vmem, size = 0x2000, scoped, tag = 'output window, operand 0']
    %7 = vsyncpa [#allocation5], 0
    %8 = vsyncpa [#allocation3], 0
    %s9 = scalar_lea.sflag [#allocation3], 1
    %10 = vsyncpa %s9, 0
    %11 = vsyncpa [#allocation4], 0
    %s12 = scalar_lea.sflag [#allocation4], 1
    %13 = vsyncpa %s12, 0
    loop: start=0, step=1, limit=4
    $region2: #{tpu_custom_call.1} parent=1 // loop_pre_header
      _
    $region3: #{tpu_custom_call.1} parent=1 // loop_header
      %s15 = sphi 0, %s19
      %p16 = scmp.ge.s32.totalorder %s15, 4
      %s23 = sphi 0, %s23
      %s25 = sphi 0, %s23
      %s26 = sphi 0, %s25
      %s40 = sphi 0, %s26
      %s46 = sphi 0, %s48
      %s49 = sphi 0, %s46
      %s50 = sphi 0, %s49
      %s66 = sphi 0, %s50
      %s72 = sphi 0, %s74
      %s75 = sphi 0, %s72
      %s76 = sphi 0, %s75
      %s92 = sphi 0, %s76
    $region4: #{tpu_custom_call.1} parent=1 // loop_header_branch
      %18 = sbr.rel (%p16) target = $region8
    $region5: #{tpu_custom_call.1} parent=1 // loop_body
      %s20 = ssub.s32 %s15, 1
      %s21 = ssub.s32 %s15, 2
      %s22 = sadd.s32 %s15, 1
      %s24 = sadd.s32 %s23, 1
      %p27 = scmp.eq.s32.totalorder %s15, 1
      %p28 = scmp.ne.s32.totalorder %s23, %s25
      %p29 = scmp.eq.s32.totalorder %s15, 0
      %p30 = por %p28, %p29
      %p31 = scmp.ne.s32.totalorder %s23, %s25
      %p32 = scmp.eq.s32.totalorder %s20, 1
      %p33 = por %p31, %p32
      %p34 = scmp.ne.s32.totalorder %s25, %s26
      %p35 = scmp.eq.s32.totalorder %s20, 0
      %p36 = por %p34, %p35
      %p37 = scmp.ne.s32.totalorder %s25, %s26
      %p38 = scmp.eq.s32.totalorder %s21, 1
      %p39 = por %p37, %p38
      %p41 = scmp.ne.s32.totalorder %s26, %s40
      %p42 = scmp.eq.s32.totalorder %s21, 0
      %p43 = por %p41, %p42
      %s44 = ssub.s32 %s15, %s22
      %p45 = scmp.eq.s32.totalorder %s44, 0
      %s47 = sadd.s32 %s46, 1
      %s48 = scalar_select %p45, %s46, %s47
      %p51 = pneg %p45
      %p52 = scmp.eq.s32.totalorder %s15, 1
      %p53 = por %p51, %p52
      %p54 = scmp.ne.s32.totalorder %s46, %s49
      %p55 = scmp.eq.s32.totalorder %s15, 0
      %p56 = por %p54, %p55
      %p57 = scmp.ne.s32.totalorder %s46, %s49
      %p58 = scmp.eq.s32.totalorder %s20, 1
      %p59 = por %p57, %p58
      %p60 = scmp.ne.s32.totalorder %s49, %s50
      %p61 = scmp.eq.s32.totalorder %s20, 0
      %p62 = por %p60, %p61
      %p63 = scmp.ne.s32.totalorder %s49, %s50
      %p64 = scmp.eq.s32.totalorder %s21, 1
      %p65 = por %p63, %p64
      %p67 = scmp.ne.s32.totalorder %s50, %s66
      %p68 = scmp.eq.s32.totalorder %s21, 0
      %p69 = por %p67, %p68
      %s70 = ssub.s32 %s15, %s22
      %p71 = scmp.eq.s32.totalorder %s70, 0
      %s73 = sadd.s32 %s72, 1
      %s74 = scalar_select %p71, %s72, %s73
      %p77 = pneg %p71
      %p78 = scmp.eq.s32.totalorder %s15, 1
      %p79 = por %p77, %p78
      %p80 = scmp.ne.s32.totalorder %s72, %s75
      %p81 = scmp.eq.s32.totalorder %s15, 0
      %p82 = por %p80, %p81
      %p83 = scmp.ne.s32.totalorder %s72, %s75
      %p84 = scmp.eq.s32.totalorder %s20, 1
      %p85 = por %p83, %p84
      %p86 = scmp.ne.s32.totalorder %s75, %s76
      %p87 = scmp.eq.s32.totalorder %s20, 0
      %p88 = por %p86, %p87
      %p89 = scmp.ne.s32.totalorder %s75, %s76
      %p90 = scmp.eq.s32.totalorder %s21, 1
      %p91 = por %p89, %p90
      %p93 = scmp.ne.s32.totalorder %s76, %s92
      %p94 = scmp.eq.s32.totalorder %s21, 0
      %p95 = por %p93, %p94
      %p96 = scmp.le.s32.totalorder 1, %s15
      %p97 = scmp.lt.s32.totalorder %s15, 3
      %p98 = pnand %p96, %p97
      %p99 = pneg %p98
      // Predicated region
      $region9: #{tpu_custom_call.1} parent=5 // pred_check
        _
      $region10: #{tpu_custom_call.1} parent=5 // pred_check_branch
        %101 = sbr.rel (%p98) target = $region12
      $region11: #{tpu_custom_call.1} parent=5 // pred_region
        %s102 = ssub.s32 %s15, 1
        // Predicated region
        $region13: #{tpu_custom_call.1} parent=11 // pred_check
          %p103 = pneg %p36
        $region14: #{tpu_custom_call.1} parent=11 // pred_check_branch
          %105 = sbr.rel (%p103) target = $region16
        $region15: #{tpu_custom_call.1} parent=11 // pred_region
          %s107 = ssub.s32 16, 16
          %108 = vsyncadd [#allocation5], %s107
          %111 = dma.hbm_to_smem %s0, 16, [#allocation2], [#allocation5]
        $region16: #{tpu_custom_call.1} parent=11 // pred_fallthru
          _
      $region12: #{tpu_custom_call.1} parent=5 // pred_fallthru
        _
      %p112 = scmp.lt.s32.totalorder %s15, 2
      // Predicated region
      $region17: #{tpu_custom_call.1} parent=5 // pred_check
        %p113 = pneg %p112
      $region18: #{tpu_custom_call.1} parent=5 // pred_check_branch
        %115 = sbr.rel (%p113) target = $region20
      $region19: #{tpu_custom_call.1} parent=5 // pred_region
        // Predicated region
        $region21: #{tpu_custom_call.1} parent=19 // pred_check
          %p116 = pneg %p56
        $region22: #{tpu_custom_call.1} parent=19 // pred_check_branch
          %118 = sbr.rel (%p116) target = $region24
        $region23: #{tpu_custom_call.1} parent=19 // pred_region
          %s119 = sand.u32 %s46, 1
          %s120 = scalar_lea.sflag [#allocation3], %s119
          %s121 = sand.u32 %s46, 1
          %s122 = smul.addr %s121, 8
          %s123 = scalar_lea.vmem [#allocation6], %s122
          %s125 = ssub.s32 128, 128
          %126 = vsyncadd %s120, %s125
          %s127 = smul.addr %s15, 128
          %s128 = scalar_lea.hbm %s1, %s127
          %s130 = sshll.u32 %s123, 4
          %s131 = int_to_ptr.vmem [resolvable:$true] %s130
          %133 = dma.hbm_to_vmem [thread:$0]  %s128, 128, %s131, %s120
        $region24: #{tpu_custom_call.1} parent=19 // pred_fallthru
          _
      $region20: #{tpu_custom_call.1} parent=5 // pred_fallthru
        _
      %p134 = scmp.le.s32.totalorder 1, %s15
      %p135 = scmp.lt.s32.totalorder %s15, 3
      %p136 = pnand %p134, %p135
      %p137 = pneg %p136
      // Predicated region
      $region25: #{tpu_custom_call.1} parent=5 // pred_check
        _
      $region26: #{tpu_custom_call.1} parent=5 // pred_check_branch
        %139 = sbr.rel (%p136) target = $region28
      $region27: #{tpu_custom_call.1} parent=5 // pred_region
        %s140 = ssub.s32 %s15, 1
        // Predicated region
        $region29: #{tpu_custom_call.1} parent=27 // pred_check
          %p141 = pneg %p36
        $region30: #{tpu_custom_call.1} parent=27 // pred_check_branch
          %143 = sbr.rel (%p141) target = $region32
        $region31: #{tpu_custom_call.1} parent=27 // pred_region
          %144 = dma.done [#allocation5], 16
        $region32: #{tpu_custom_call.1} parent=27 // pred_fallthru
          _
        %s145 = sand.u32 %s49, 1
        %s146 = scalar_lea.sflag [#allocation3], %s145
        %s147 = sand.u32 %s49, 1
        %s148 = smul.addr %s147, 8
        %s149 = scalar_lea.vmem [#allocation6], %s148
        // Predicated region
        $region33: #{tpu_custom_call.1} parent=27 // pred_check
          %p150 = pneg %p62
        $region34: #{tpu_custom_call.1} parent=27 // pred_check_branch
          %152 = sbr.rel (%p150) target = $region36
        $region35: #{tpu_custom_call.1} parent=27 // pred_region
          %153 = dma.done %s146, 128
        $region36: #{tpu_custom_call.1} parent=27 // pred_fallthru
          _
        %154 = sfence
        %p155 = pneg %p36
        %p156 = pneg %p33
        %s157 = sand.u32 %s49, 1
        %s158 = scalar_lea.sflag [#allocation3], %s157
        %s159 = sand.u32 %s49, 1
        %s160 = smul.addr %s159, 8
        %s161 = scalar_lea.vmem [#allocation6], %s160
        %p162 = pneg %p62
        %p163 = pneg %p59
        %p164 = pneg %p88
        %p165 = pneg %p85
        %s166 = sand.u32 %s75, 1
        %s167 = scalar_lea.sflag [#allocation4], %s166
        %s168 = sand.u32 %s75, 1
        %s169 = smul.addr %s168, 8
        %s170 = scalar_lea.vmem [#allocation7], %s169
        %v171 = vld [vmem:[%s149] sm:$0xff]
        %s172 = sld [smem:[#allocation2]]
        %v173 = vstv %s172
        %vm174 = vcmp.lt.f32.partialorder %v171, %v173
        %s175 = sld [smem:[#allocation2 + $0xa]]
        %s176 = sld [smem:[#allocation2 + $0xb]]
        %v177 = vstv %s175
        %v178 = vstv %s176
        %v179 = vsel %vm174, %v177, %v178
        %s180 = sld [smem:[#allocation2 + $0x15]]
        %s181 = sld [smem:[#allocation2 + $0x16]]
        %v182 = vstv %s180
        %v183 = vstv %s181
        %v184 = vsel %vm174, %v182, %v183
        %s185 = sld [smem:[#allocation2 + $0x20]]
        %s186 = sld [smem:[#allocation2 + $0x21]]
        %v187 = vstv %s185
        %v188 = vstv %s186
        %v189 = vsel %vm174, %v187, %v188
        %s190 = sld [smem:[#allocation2 + $0x2b]]
        %s191 = sld [smem:[#allocation2 + $0x2c]]
        %v192 = vstv %s190
        %v193 = vstv %s191
        %v194 = vsel %vm174, %v192, %v193
        %s195 = sld [smem:[#allocation2 + $0x36]]
        %s196 = sld [smem:[#allocation2 + $0x37]]
        %v197 = vstv %s195
        %v198 = vstv %s196
        %v199 = vsel %vm174, %v197, %v198
        %s200 = sld [smem:[#allocation2 + $0x1]]
        %v201 = vstv %s200
        %vm202 = vcmp.gt.f32.partialorder %v171, %v201
        %s203 = sld [smem:[#allocation2 + $0xc]]
        %v204 = vstv %s203
        %v205 = vsel %vm202, %v204, %v179
        %s206 = sld [smem:[#allocation2 + $0x17]]
        %v207 = vstv %s206
        %v208 = vsel %vm202, %v207, %v184
        %s209 = sld [smem:[#allocation2 + $0x22]]
        %v210 = vstv %s209
        %v211 = vsel %vm202, %v210, %v189
        %s212 = sld [smem:[#allocation2 + $0x2d]]
        %v213 = vstv %s212
        %v214 = vsel %vm202, %v213, %v194
        %s215 = sld [smem:[#allocation2 + $0x38]]
        %v216 = vstv %s215
        %v217 = vsel %vm202, %v216, %v199
        %s218 = sld [smem:[#allocation2 + $0x2]]
        %v219 = vstv %s218
        %vm220 = vcmp.gt.f32.partialorder %v171, %v219
        %s221 = sld [smem:[#allocation2 + $0xd]]
        %v222 = vstv %s221
        %v223 = vsel %vm220, %v222, %v205
        %s224 = sld [smem:[#allocation2 + $0x18]]
        %v225 = vstv %s224
        %v226 = vsel %vm220, %v225, %v208
        %s227 = sld [smem:[#allocation2 + $0x23]]
        %v228 = vstv %s227
        %v229 = vsel %vm220, %v228, %v211
        %s230 = sld [smem:[#allocation2 + $0x2e]]
        %v231 = vstv %s230
        %v232 = vsel %vm220, %v231, %v214
        %s233 = sld [smem:[#allocation2 + $0x39]]
        %v234 = vstv %s233
        %v235 = vsel %vm220, %v234, %v217
        %s236 = sld [smem:[#allocation2 + $0x3]]
        %v237 = vstv %s236
        %vm238 = vcmp.gt.f32.partialorder %v171, %v237
        %s239 = sld [smem:[#allocation2 + $0xe]]
        %v240 = vstv %s239
        %v241 = vsel %vm238, %v240, %v223
        %s242 = sld [smem:[#allocation2 + $0x19]]
        %v243 = vstv %s242
        %v244 = vsel %vm238, %v243, %v226
        %s245 = sld [smem:[#allocation2 + $0x24]]
        %v246 = vstv %s245
        %v247 = vsel %vm238, %v246, %v229
        %s248 = sld [smem:[#allocation2 + $0x2f]]
        %v249 = vstv %s248
        %v250 = vsel %vm238, %v249, %v232
        %s251 = sld [smem:[#allocation2 + $0x3a]]
        %v252 = vstv %s251
        %v253 = vsel %vm238, %v252, %v235
        %s254 = sld [smem:[#allocation2 + $0x4]]
        %v255 = vstv %s254
        %vm256 = vcmp.gt.f32.partialorder %v171, %v255
        %s257 = sld [smem:[#allocation2 + $0xf]]
        %v258 = vstv %s257
        %v259 = vsel %vm256, %v258, %v241
        %s260 = sld [smem:[#allocation2 + $0x1a]]
        %v261 = vstv %s260
        %v262 = vsel %vm256, %v261, %v244
        %s263 = sld [smem:[#allocation2 + $0x25]]
        %v264 = vstv %s263
        %v265 = vsel %vm256, %v264, %v247
        %s266 = sld [smem:[#allocation2 + $0x30]]
        %v267 = vstv %s266
        %v268 = vsel %vm256, %v267, %v250
        %s269 = sld [smem:[#allocation2 + $0x3b]]
        %v270 = vstv %s269
        %v271 = vsel %vm256, %v270, %v253
        %s272 = sld [smem:[#allocation2 + $0x5]]
        %v273 = vstv %s272
        %vm274 = vcmp.gt.f32.partialorder %v171, %v273
        %s275 = sld [smem:[#allocation2 + $0x10]]
        %v276 = vstv %s275
        %v277 = vsel %vm274, %v276, %v259
        %s278 = sld [smem:[#allocation2 + $0x1b]]
        %v279 = vstv %s278
        %v280 = vsel %vm274, %v279, %v262
        %s281 = sld [smem:[#allocation2 + $0x26]]
        %v282 = vstv %s281
        %v283 = vsel %vm274, %v282, %v265
        %s284 = sld [smem:[#allocation2 + $0x31]]
        %v285 = vstv %s284
        %v286 = vsel %vm274, %v285, %v268
        %s287 = sld [smem:[#allocation2 + $0x3c]]
        %v288 = vstv %s287
        %v289 = vsel %vm274, %v288, %v271
        %s290 = sld [smem:[#allocation2 + $0x6]]
        %v291 = vstv %s290
        %vm292 = vcmp.gt.f32.partialorder %v171, %v291
        %s293 = sld [smem:[#allocation2 + $0x11]]
        %v294 = vstv %s293
        %v295 = vsel %vm292, %v294, %v277
        %s296 = sld [smem:[#allocation2 + $0x1c]]
        %v297 = vstv %s296
        %v298 = vsel %vm292, %v297, %v280
        %s299 = sld [smem:[#allocation2 + $0x27]]
        %v300 = vstv %s299
        %v301 = vsel %vm292, %v300, %v283
        %s302 = sld [smem:[#allocation2 + $0x32]]
        %v303 = vstv %s302
        %v304 = vsel %vm292, %v303, %v286
        %s305 = sld [smem:[#allocation2 + $0x3d]]
        %v306 = vstv %s305
        %v307 = vsel %vm292, %v306, %v289
        %s308 = sld [smem:[#allocation2 + $0x7]]
        %v309 = vstv %s308
        %vm310 = vcmp.gt.f32.partialorder %v171, %v309
        %s311 = sld [smem:[#allocation2 + $0x12]]
        %v312 = vstv %s311
        %v313 = vsel %vm310, %v312, %v295
        %s314 = sld [smem:[#allocation2 + $0x1d]]
        %v315 = vstv %s314
        %v316 = vsel %vm310, %v315, %v298
        %s317 = sld [smem:[#allocation2 + $0x28]]
        %v318 = vstv %s317
        %v319 = vsel %vm310, %v318, %v301
        %s320 = sld [smem:[#allocation2 + $0x33]]
        %v321 = vstv %s320
        %v322 = vsel %vm310, %v321, %v304
        %s323 = sld [smem:[#allocation2 + $0x3e]]
        %v324 = vstv %s323
        %v325 = vsel %vm310, %v324, %v307
        %s326 = sld [smem:[#allocation2 + $0x8]]
        %v327 = vstv %s326
        %vm328 = vcmp.gt.f32.partialorder %v171, %v327
        %s329 = sld [smem:[#allocation2 + $0x13]]
        %v330 = vstv %s329
        %v331 = vsel %vm328, %v330, %v313
        %s332 = sld [smem:[#allocation2 + $0x1e]]
        %v333 = vstv %s332
        %v334 = vsel %vm328, %v333, %v316
        %s335 = sld [smem:[#allocation2 + $0x29]]
        %v336 = vstv %s335
        %v337 = vsel %vm328, %v336, %v319
        %s338 = sld [smem:[#allocation2 + $0x34]]
        %v339 = vstv %s338
        %v340 = vsel %vm328, %v339, %v322
        %s341 = sld [smem:[#allocation2 + $0x3f]]
        %v342 = vstv %s341
        %v343 = vsel %vm328, %v342, %v325
        %s344 = sld [smem:[#allocation2 + $0x9]]
        %v345 = vstv %s344
        %vm346 = vcmp.gt.f32.partialorder %v171, %v345
        %s347 = sld [smem:[#allocation2 + $0x14]]
        %v348 = vstv %s347
        %v349 = vsel %vm346, %v348, %v331
        %s350 = sld [smem:[#allocation2 + $0x1f]]
        %v351 = vstv %s350
        %v352 = vsel %vm346, %v351, %v334
        %s353 = sld [smem:[#allocation2 + $0x2a]]
        %v354 = vstv %s353
        %v355 = vsel %vm346, %v354, %v337
        %s356 = sld [smem:[#allocation2 + $0x35]]
        %v357 = vstv %s356
        %v358 = vsel %vm346, %v357, %v340
        %s359 = sld [smem:[#allocation2 + $0x40]]
        %v360 = vstv %s359
        %v361 = vsel %vm346, %v360, %v343
        %v362 = vsub.f32 %v171, %v349
        %v363 = vmul.f32 %v361, %v362
        %v364 = vadd.f32 %v363, %v358
        %v365 = vmul.f32 %v364, %v362
        %v366 = vadd.f32 %v365, %v355
        %v367 = vmul.f32 %v366, %v362
        %v368 = vadd.f32 %v367, %v352
        %369 = vst [vmem:[%s170] sm:$0xff] %v368
        %s370 = sand.u32 %s75, 1
        %s371 = scalar_lea.sflag [#allocation4], %s370
        %s372 = sand.u32 %s75, 1
        %s373 = smul.addr %s372, 8
        %s374 = scalar_lea.vmem [#allocation7], %s373
        // Predicated region
        $region37: #{tpu_custom_call.1} parent=27 // pred_check
          %p375 = pneg %p85
        $region38: #{tpu_custom_call.1} parent=27 // pred_check_branch
          %377 = sbr.rel (%p375) target = $region40
        $region39: #{tpu_custom_call.1} parent=27 // pred_region
          %s379 = ssub.s32 128, 128
          %380 = vsyncadd %s371, %s379
          %s381 = smul.addr %s20, 128
          %s382 = scalar_lea.hbm %s2, %s381
          %s384 = sshll.u32 %s374, 4
          %s385 = int_to_ptr.vmem [resolvable:$true] %s384
          %387 = dma.vmem_to_hbm [thread:$0]  %s385, 128, %s382, %s371
        $region40: #{tpu_custom_call.1} parent=27 // pred_fallthru
          _
      $region28: #{tpu_custom_call.1} parent=5 // pred_fallthru
        _
      %p388 = scmp.le.s32.totalorder 2, %s15
      // Predicated region
      $region41: #{tpu_custom_call.1} parent=5 // pred_check
        %p389 = pneg %p388
      $region42: #{tpu_custom_call.1} parent=5 // pred_check_branch
        %391 = sbr.rel (%p389) target = $region44
      $region43: #{tpu_custom_call.1} parent=5 // pred_region
        %s392 = ssub.s32 %s15, 2
        // Predicated region
        $region45: #{tpu_custom_call.1} parent=43 // pred_check
          %p393 = pneg %p91
        $region46: #{tpu_custom_call.1} parent=43 // pred_check_branch
          %395 = sbr.rel (%p393) target = $region48
        $region47: #{tpu_custom_call.1} parent=43 // pred_region
          %s396 = sand.u32 %s76, 1
          %s397 = scalar_lea.sflag [#allocation4], %s396
          %s398 = sand.u32 %s76, 1
          %s399 = smul.addr %s398, 8
          %s400 = scalar_lea.vmem [#allocation7], %s399
          %401 = dma.done %s397, 128
        $region48: #{tpu_custom_call.1} parent=43 // pred_fallthru
          _
      $region44: #{tpu_custom_call.1} parent=5 // pred_fallthru
        _
    $region6: #{tpu_custom_call.1} parent=1 // loop_footer
      %s19 = sadd.s32 1, %s15
    $region7: #{tpu_custom_call.1} parent=1 // loop_footer_branch
      %14 = sbr.rel target = $region3
    $region8: #{tpu_custom_call.1} parent=1 // loop_exit
      _
    %402 = vsyncpa [#allocation3], 1
    %s403 = scalar_lea.sflag [#allocation3], 1
    %404 = vsyncpa %s403, 1
    %405 = vsyncpa [#allocation4], 1
    %s406 = scalar_lea.sflag [#allocation4], 1
    %407 = vsyncpa %s406, 1
    %408 = vsyncpa [#allocation5], 1
    %s409 = scalar_lea.sflag [#allocation5], 1
    %410 = vsyncpa %s409, 1

</llo_original>
